<compile_context>
chip_gen: v5e
topology: v5e:2x2
jax: 0.10.0
libtpu: 0.0.40
codegen_flags: <defaults>
</compile_context>

<pallas_src>
import functools
import numpy as np

import jax
import jax.numpy as jnp
from jax.experimental import pallas as pl
from jax.experimental.pallas import tpu as pltpu

_EPS = 1e-8
_TILE_N_MAX = 256   # sized so ~16 live (TILE_N, TILE_T) f32 temporaries plus double-buffered
_TILE_T_MAX = 512   # input blocks stay well under v7x's 32 MiB scoped / 64 MiB physical VMEM


def _round_up(x, m):
    return ((x + m - 1) // m) * m


# --------------------------------------------------------------------------------------
# Pallas kernel: one (TILE_N, TILE_T) tile of  cost = bw*L1 + cw*(-p[label]) + gw*(-GIoU)
# --------------------------------------------------------------------------------------
def _make_cost_kernel(class_weight, bbox_weight, giou_weight):
    cw = float(class_weight)
    bw = float(bbox_weight)
    gw = float(giou_weight)

    def kernel(onehot_ref, plabels_ref, pbox_ref, tbox_ref, cost_ref):
        """onehot_ref : (C_pad, TILE_T) f32  one-hot target labels (hoisted out of kernel)
        plabels_ref: (TILE_N, C_pad) f32  predicted class probabilities
        pbox_ref   : (TILE_N, 4)     f32  predicted boxes, cxcywh
        tbox_ref   : (4, TILE_T)     f32  target boxes, cxcywh, transposed
        cost_ref   : (TILE_N, TILE_T) f32 output cost tile
        """
        # classification cost: -pred_probs[:, target_labels] via one-hot matmul (MXU)
        cost_class = -jnp.dot(plabels_ref[...], onehot_ref[...],
                              preferred_element_type=jnp.float32)

        p_cx = pbox_ref[:, 0:1]
        p_cy = pbox_ref[:, 1:2]
        p_w = pbox_ref[:, 2:3]
        p_h = pbox_ref[:, 3:4]
        t_cx = tbox_ref[0:1, :]
        t_cy = tbox_ref[1:2, :]
        t_w = tbox_ref[2:3, :]
        t_h = tbox_ref[3:4, :]

        # L1 cdist in cxcywh space, broadcast (TILE_N, 1) against (1, TILE_T)
        cost_bbox = (jnp.abs(p_cx - t_cx) + jnp.abs(p_cy - t_cy)
                     + jnp.abs(p_w - t_w) + jnp.abs(p_h - t_h))

        # GIoU cost (cxcywh -> xyxy)
        px1 = p_cx - 0.5 * p_w
        px2 = p_cx + 0.5 * p_w
        py1 = p_cy - 0.5 * p_h
        py2 = p_cy + 0.5 * p_h
        tx1 = t_cx - 0.5 * t_w
        tx2 = t_cx + 0.5 * t_w
        ty1 = t_cy - 0.5 * t_h
        ty2 = t_cy + 0.5 * t_h

        area_p = p_w * p_h
        area_t = t_w * t_h

        iw = jnp.maximum(jnp.minimum(px2, tx2) - jnp.maximum(px1, tx1), 0.0)
        ih = jnp.maximum(jnp.minimum(py2, ty2) - jnp.maximum(py1, ty1), 0.0)
        inter = iw * ih
        union = area_p + area_t - inter
        # divides -> EUP approximate reciprocal (otherwise-idle slot in this VPU-bound body);
        # eps keeps zero-padded rows/columns finite instead of NaN/Inf.
        iou = inter * pl.reciprocal(union + _EPS, approx=True)

        cw_enc = jnp.maximum(jnp.maximum(px2, tx2) - jnp.minimum(px1, tx1), 0.0)
        ch_enc = jnp.maximum(jnp.maximum(py2, ty2) - jnp.minimum(py1, ty1), 0.0)
        area_c = cw_enc * ch_enc
        giou = iou - (area_c - union) * pl.reciprocal(area_c + _EPS, approx=True)

        cost_ref[...] = bw * cost_bbox + cw * cost_class + gw * (-giou)

    return kernel


# --------------------------------------------------------------------------------------
# Cached, jitted wrapper: device-side padding + one-hot + tiled pallas_call
# --------------------------------------------------------------------------------------
@functools.lru_cache(maxsize=None)
def _get_cost_matrix_fn(n, c, t, class_weight, bbox_weight, giou_weight):
    c_pad = _round_up(c, 8)                            # full-dim class block; no 128x blow-up
    tile_n = min(_TILE_N_MAX, _round_up(n, 8))
    n_pad = _round_up(n, tile_n)
    tile_t = min(_TILE_T_MAX, _round_up(max(t, 1), 128))
    t_pad = _round_up(max(t, 1), tile_t)
    grid = (n_pad // tile_n, t_pad // tile_t)

    # VMEM budget from tile arithmetic: double-buffered input/output blocks + elementwise
    # temporaries; clamped to be safe on v5e (16 MiB scoped default) and v7x (64 MiB physical).
    block_bytes = 4 * (tile_n * c_pad + c_pad * tile_t + tile_n * 4 + 4 * tile_t
                       + tile_n * tile_t)
    temp_bytes = 4 * 16 * tile_n * tile_t
    vmem_limit = int(min(max(2 * block_bytes + temp_bytes + (4 << 20), 16 << 20), 40 << 20))

    cost_call = pl.pallas_call(
        _make_cost_kernel(class_weight, bbox_weight, giou_weight),
        out_shape=jax.ShapeDtypeStruct((n_pad, t_pad), jnp.float32),
        grid=grid,
        in_specs=[
            pl.BlockSpec((c_pad, tile_t), lambda i, j: (0, j)),   # one-hot labels
            pl.BlockSpec((tile_n, c_pad), lambda i, j: (i, 0)),   # predicted class probs
            pl.BlockSpec((tile_n, 4), lambda i, j: (i, 0)),       # predicted boxes
            pl.BlockSpec((4, tile_t), lambda i, j: (0, j)),       # target boxes (transposed)
        ],
        out_specs=pl.BlockSpec((tile_n, tile_t), lambda i, j: (i, j)),
        compiler_params=pltpu.CompilerParams(
            dimension_semantics=("parallel", "parallel"),
            vmem_limit_bytes=vmem_limit,
        ),
    )

    def fn(pred_labels, pred_bboxes, target_labels, target_bboxes):
        # Device-side padding (fused under jit; no host-side numpy padding per call).
        plabels = jnp.zeros((n_pad, c_pad), jnp.float32).at[:n, :c].set(
            pred_labels.astype(jnp.float32))
        pbox = jnp.zeros((n_pad, 4), jnp.float32).at[:n, :].set(
            pred_bboxes.astype(jnp.float32))
        tlab = jnp.full((t_pad,), -1, jnp.int32).at[:t].set(target_labels.astype(jnp.int32))
        tbox_t = jnp.zeros((4, t_pad), jnp.float32).at[:, :t].set(
            jnp.transpose(target_bboxes.astype(jnp.float32)))
        # One-hot hoisted out of the kernel: built once per call, not once per N-tile.
        onehot = (tlab[None, :] == jax.lax.broadcasted_iota(jnp.int32, (c_pad, t_pad), 0)
                  ).astype(jnp.float32)
        cost = cost_call(onehot, plabels, pbox, tbox_t)
        return cost[:n, :t]

    return jax.jit(fn)


# --------------------------------------------------------------------------------------
# Host-side rectangular linear-sum-assignment (shortest-augmenting-path, O(n^3)).
# --------------------------------------------------------------------------------------
# TODO(synk): scipy.optimize.linear_sum_assignment (sequential Hungarian solver) has no
# Pallas equivalent; solved on host with a pure-numpy Jonker-Volgenant-style solver.
def _linear_sum_assignment(cost):
    cost = np.asarray(cost, dtype=np.float64)
    if cost.size == 0 or 0 in cost.shape:
        return np.zeros((0,), np.int64), np.zeros((0,), np.int64)
    transposed = cost.shape[0] > cost.shape[1]
    C = cost.T if transposed else cost            # (nrow, ncol) with nrow <= ncol
    nrow, ncol = C.shape

    INF = np.inf
    u = np.zeros(nrow + 1)
    v = np.zeros(ncol + 1)
    p = np.zeros(ncol + 1, dtype=np.int64)        # p[j] = 1-indexed row matched to column j
    way = np.zeros(ncol + 1, dtype=np.int64)

    for i in range(1, nrow + 1):
        p[0] = i
        j0 = 0
        minv = np.full(ncol + 1, INF)
        used = np.zeros(ncol + 1, dtype=bool)
        while True:
            used[j0] = True
            i0 = p[j0]
            delta = INF
            j1 = 0
            for j in range(1, ncol + 1):
                if not used[j]:
                    cur = C[i0 - 1, j - 1] - u[i0] - v[j]
                    if cur < minv[j]:
                        minv[j] = cur
                        way[j] = j0
                    if minv[j] < delta:
                        delta = minv[j]
                        j1 = j
            for j in range(ncol + 1):
                if used[j]:
                    u[p[j]] += delta
                    v[j] -= delta
                else:
                    minv[j] -= delta
            j0 = j1
            if p[j0] == 0:
                break
        while j0 != 0:
            j1 = way[j0]
            p[j0] = p[j1]
            j0 = j1

    rows, cols = [], []
    for j in range(ncol):
        if p[j + 1] > 0:
            rows.append(p[j + 1] - 1)
            cols.append(j)
    rows = np.asarray(rows, dtype=np.int64)
    cols = np.asarray(cols, dtype=np.int64)
    if transposed:
        r, c = cols, rows
    else:
        r, c = rows, cols
    order = np.argsort(r, kind="stable")
    return r[order], c[order]


# --------------------------------------------------------------------------------------
# Forward pass (matches HungarianMatcher.forward semantics)
# --------------------------------------------------------------------------------------
def hungarian_matcher_forward(predicted_labels, predicted_bboxes,
                              ground_truth_labels, ground_truth_bboxes, mask,
                              class_weight=1, bbox_weight=5, giou_weight=2):
    if any(w < 1 for w in (class_weight, bbox_weight, giou_weight)):
        raise ValueError("All cost weights have to be greater or equal to 1")

    pred_labels = jnp.asarray(predicted_labels, jnp.float32)    # (bs*nq, C)
    pred_bboxes = jnp.asarray(predicted_bboxes, jnp.float32)    # (bs*nq, 4)
    gt_labels = np.asarray(ground_truth_labels)                 # (bs, nq, 1)
    gt_bboxes = np.asarray(ground_truth_bboxes, np.float32)     # (bs, nq, 4)
    mask_np = np.asarray(mask)

    bs, num_queries = gt_labels.shape[:2]
    mask2d = mask_np[:, :, 0].astype(bool)                      # mask[:, :, :1].squeeze(-1)
    number_gt_elements = [int(m.sum()) for m in mask2d]

    # TODO(synk): dynamic-shape boolean-mask gather of valid GT is data-dependent; kept on host.
    target_labels = gt_labels[mask2d][..., 0].astype(np.int32)  # (T,)
    target_bboxes = gt_bboxes[mask2d]                           # (T, 4)

    n, c = pred_labels.shape
    t = int(target_labels.shape[0])

    if t > 0:
        fn = _get_cost_matrix_fn(int(n), int(c), t,
                                 float(class_weight), float(bbox_weight), float(giou_weight))
        cost = np.asarray(fn(pred_labels, pred_bboxes,
                             jnp.asarray(target_labels), jnp.asarray(target_bboxes)))
    else:
        cost = np.zeros((n, 0), np.float32)
    cost_matrix = cost.reshape(bs, num_queries, t)

    pred_idx, tgt_idx = [], []
    offset = 0
    for i, n_i in enumerate(number_gt_elements):
        c_i = cost_matrix[i, :, offset:offset + n_i]
        rows, cols = _linear_sum_assignment(c_i)
        pred_idx.append(rows.astype(np.int32) + i * num_queries)
        tgt_idx.append(cols.astype(np.int32) + i * num_queries)
        offset += n_i

    prediction_indices = jnp.asarray(
        np.concatenate(pred_idx) if pred_idx else np.zeros((0,), np.int32))
    target_indices = jnp.asarray(
        np.concatenate(tgt_idx) if tgt_idx else np.zeros((0,), np.int32))
    return prediction_indices, target_indices


if __name__ == "__main__":
    key = jax.random.PRNGKey(0)
    bs, num_queries, num_classes = 2, 8, 8
    n = bs * num_queries

    k1, k2, k3, k4, k5 = jax.random.split(key, 5)

    predicted_labels = jax.nn.softmax(jax.random.normal(k1, (n, num_classes)), axis=-1)
    cxcy = jax.random.uniform(k2, (n, 2), minval=0.2, maxval=0.8)
    wh = jax.random.uniform(k3, (n, 2), minval=0.05, maxval=0.3)
    predicted_bboxes = jnp.concatenate([cxcy, wh], axis=-1)

    ground_truth_labels = jax.random.randint(k4, (bs, num_queries, 1), 0, num_classes)
    gcxcy = jax.random.uniform(k5, (bs, num_queries, 2), minval=0.2, maxval=0.8)
    gwh = jax.random.uniform(jax.random.fold_in(k5, 1), (bs, num_queries, 2),
                             minval=0.05, maxval=0.3)
    ground_truth_bboxes = jnp.concatenate([gcxcy, gwh], axis=-1)

    # batch 0 has 5 valid GT objects, batch 1 has 3
    valid_counts = [5, 3]
    mask_np = np.zeros((bs, num_queries, 4), dtype=bool)
    for b, cnt in enumerate(valid_counts):
        mask_np[b, :cnt, :] = True
    mask = jnp.asarray(mask_np)

    prediction_indices, target_indices = hungarian_matcher_forward(
        predicted_labels, predicted_bboxes, ground_truth_labels, ground_truth_bboxes, mask)

    jax.block_until_ready(prediction_indices)
    jax.block_until_ready(target_indices)
    print("KERNEL_OK")
</pallas_src>

<mosaic_0001>
module attributes {stable_mosaic.version = 11 : i64} {
  func.func @kernel(%arg0: i32, %arg1: i32, %arg2: memref<8x128xf32, #tpu.memory_space<vmem>>, %arg3: memref<16x8xf32, #tpu.memory_space<vmem>>, %arg4: memref<16x4xf32, #tpu.memory_space<vmem>>, %arg5: memref<4x128xf32, #tpu.memory_space<vmem>>, %arg6: memref<16x128xf32, #tpu.memory_space<vmem>>) attributes {dimension_semantics = [#tpu.dimension_semantics<parallel>, #tpu.dimension_semantics<parallel>], iteration_bounds = array<i64: 1, 1>, scalar_prefetch = 0 : i64, scratch_operands = 0 : i64, tpu.core_type = #tpu.core_type<tc>, window_params = [{transform_indices = @transform_0, window_bounds = array<i64: 8, 128>}, {transform_indices = @transform_1, window_bounds = array<i64: 16, 8>}, {transform_indices = @transform_2, window_bounds = array<i64: 16, 4>}, {transform_indices = @transform_3, window_bounds = array<i64: 4, 128>}, {transform_indices = @transform_4, window_bounds = array<i64: 16, 128>}]} {
    %c0 = arith.constant 0 : index
    %c0_0 = arith.constant 0 : index
    %0 = vector.load %arg3[%c0, %c0_0] : memref<16x8xf32, #tpu.memory_space<vmem>>, vector<16x8xf32>
    %c0_1 = arith.constant 0 : index
    %c0_2 = arith.constant 0 : index
    %1 = vector.load %arg2[%c0_1, %c0_2] : memref<8x128xf32, #tpu.memory_space<vmem>>, vector<8x128xf32>
    %cst = arith.constant dense<0.000000e+00> : vector<16x128xf32>
    %2 = tpu.matmul %0, %1, %cst {dimension_numbers = #tpu.dot_dimension_numbers<[1], [0], [0], [1], [0, 0, 1, 1], [], []>} : vector<16x8xf32>, vector<8x128xf32>, vector<16x128xf32> -> vector<16x128xf32>
    %cst_3 = arith.constant 0.000000e+00 : f32
    %3 = vector.broadcast %cst_3 : f32 to vector<16x128xf32>
    %4 = arith.subf %3, %2 : vector<16x128xf32>
    %c0_4 = arith.constant 0 : index
    %c0_5 = arith.constant 0 : index
    %5 = vector.load %arg4[%c0_4, %c0_5] : memref<16x4xf32, #tpu.memory_space<vmem>>, vector<16x1xf32>
    %c0_6 = arith.constant 0 : index
    %c1 = arith.constant 1 : index
    %6 = vector.load %arg4[%c0_6, %c1] : memref<16x4xf32, #tpu.memory_space<vmem>>, vector<16x1xf32>
    %c0_7 = arith.constant 0 : index
    %c2 = arith.constant 2 : index
    %7 = vector.load %arg4[%c0_7, %c2] : memref<16x4xf32, #tpu.memory_space<vmem>>, vector<16x1xf32>
    %c0_8 = arith.constant 0 : index
    %c3 = arith.constant 3 : index
    %8 = vector.load %arg4[%c0_8, %c3] : memref<16x4xf32, #tpu.memory_space<vmem>>, vector<16x1xf32>
    %c0_9 = arith.constant 0 : index
    %c0_10 = arith.constant 0 : index
    %9 = vector.load %arg5[%c0_9, %c0_10] : memref<4x128xf32, #tpu.memory_space<vmem>>, vector<1x128xf32>
    %c1_11 = arith.constant 1 : index
    %c0_12 = arith.constant 0 : index
    %10 = vector.load %arg5[%c1_11, %c0_12] : memref<4x128xf32, #tpu.memory_space<vmem>>, vector<1x128xf32>
    %c2_13 = arith.constant 2 : index
    %c0_14 = arith.constant 0 : index
    %11 = vector.load %arg5[%c2_13, %c0_14] : memref<4x128xf32, #tpu.memory_space<vmem>>, vector<1x128xf32>
    %c3_15 = arith.constant 3 : index
    %c0_16 = arith.constant 0 : index
    %12 = vector.load %arg5[%c3_15, %c0_16] : memref<4x128xf32, #tpu.memory_space<vmem>>, vector<1x128xf32>
    %13 = vector.broadcast %5 : vector<16x1xf32> to vector<16x128xf32>
    %14 = vector.broadcast %9 : vector<1x128xf32> to vector<16x128xf32>
    %15 = arith.subf %13, %14 : vector<16x128xf32>
    %16 = math.absf %15 : vector<16x128xf32>
    %17 = vector.broadcast %6 : vector<16x1xf32> to vector<16x128xf32>
    %18 = vector.broadcast %10 : vector<1x128xf32> to vector<16x128xf32>
    %19 = arith.subf %17, %18 : vector<16x128xf32>
    %20 = math.absf %19 : vector<16x128xf32>
    %21 = arith.addf %16, %20 : vector<16x128xf32>
    %22 = vector.broadcast %7 : vector<16x1xf32> to vector<16x128xf32>
    %23 = vector.broadcast %11 : vector<1x128xf32> to vector<16x128xf32>
    %24 = arith.subf %22, %23 : vector<16x128xf32>
    %25 = math.absf %24 : vector<16x128xf32>
    %26 = arith.addf %21, %25 : vector<16x128xf32>
    %27 = vector.broadcast %8 : vector<16x1xf32> to vector<16x128xf32>
    %28 = vector.broadcast %12 : vector<1x128xf32> to vector<16x128xf32>
    %29 = arith.subf %27, %28 : vector<16x128xf32>
    %30 = math.absf %29 : vector<16x128xf32>
    %31 = arith.addf %26, %30 : vector<16x128xf32>
    %cst_17 = arith.constant 5.000000e-01 : f32
    %32 = vector.broadcast %cst_17 : f32 to vector<16x1xf32>
    %33 = arith.mulf %32, %7 : vector<16x1xf32>
    %34 = arith.subf %5, %33 : vector<16x1xf32>
    %cst_18 = arith.constant 5.000000e-01 : f32
    %35 = vector.broadcast %cst_18 : f32 to vector<16x1xf32>
    %36 = arith.mulf %35, %7 : vector<16x1xf32>
    %37 = arith.addf %5, %36 : vector<16x1xf32>
    %cst_19 = arith.constant 5.000000e-01 : f32
    %38 = vector.broadcast %cst_19 : f32 to vector<16x1xf32>
    %39 = arith.mulf %38, %8 : vector<16x1xf32>
    %40 = arith.subf %6, %39 : vector<16x1xf32>
    %cst_20 = arith.constant 5.000000e-01 : f32
    %41 = vector.broadcast %cst_20 : f32 to vector<16x1xf32>
    %42 = arith.mulf %41, %8 : vector<16x1xf32>
    %43 = arith.addf %6, %42 : vector<16x1xf32>
    %cst_21 = arith.constant 5.000000e-01 : f32
    %44 = vector.broadcast %cst_21 : f32 to vector<1x128xf32>
    %45 = arith.mulf %44, %11 : vector<1x128xf32>
    %46 = arith.subf %9, %45 : vector<1x128xf32>
    %cst_22 = arith.constant 5.000000e-01 : f32
    %47 = vector.broadcast %cst_22 : f32 to vector<1x128xf32>
    %48 = arith.mulf %47, %11 : vector<1x128xf32>
    %49 = arith.addf %9, %48 : vector<1x128xf32>
    %cst_23 = arith.constant 5.000000e-01 : f32
    %50 = vector.broadcast %cst_23 : f32 to vector<1x128xf32>
    %51 = arith.mulf %50, %12 : vector<1x128xf32>
    %52 = arith.subf %10, %51 : vector<1x128xf32>
    %cst_24 = arith.constant 5.000000e-01 : f32
    %53 = vector.broadcast %cst_24 : f32 to vector<1x128xf32>
    %54 = arith.mulf %53, %12 : vector<1x128xf32>
    %55 = arith.addf %10, %54 : vector<1x128xf32>
    %56 = arith.mulf %7, %8 : vector<16x1xf32>
    %57 = arith.mulf %11, %12 : vector<1x128xf32>
    %58 = vector.broadcast %37 : vector<16x1xf32> to vector<16x128xf32>
    %59 = vector.broadcast %49 : vector<1x128xf32> to vector<16x128xf32>
    %60 = arith.minimumf %58, %59 : vector<16x128xf32>
    %61 = vector.broadcast %34 : vector<16x1xf32> to vector<16x128xf32>
    %62 = vector.broadcast %46 : vector<1x128xf32> to vector<16x128xf32>
    %63 = arith.maximumf %61, %62 : vector<16x128xf32>
    %64 = arith.subf %60, %63 : vector<16x128xf32>
    %cst_25 = arith.constant 0.000000e+00 : f32
    %65 = vector.broadcast %cst_25 : f32 to vector<16x128xf32>
    %66 = arith.maximumf %64, %65 : vector<16x128xf32>
    %67 = vector.broadcast %43 : vector<16x1xf32> to vector<16x128xf32>
    %68 = vector.broadcast %55 : vector<1x128xf32> to vector<16x128xf32>
    %69 = arith.minimumf %67, %68 : vector<16x128xf32>
    %70 = vector.broadcast %40 : vector<16x1xf32> to vector<16x128xf32>
    %71 = vector.broadcast %52 : vector<1x128xf32> to vector<16x128xf32>
    %72 = arith.maximumf %70, %71 : vector<16x128xf32>
    %73 = arith.subf %69, %72 : vector<16x128xf32>
    %cst_26 = arith.constant 0.000000e+00 : f32
    %74 = vector.broadcast %cst_26 : f32 to vector<16x128xf32>
    %75 = arith.maximumf %73, %74 : vector<16x128xf32>
    %76 = arith.mulf %66, %75 : vector<16x128xf32>
    %77 = vector.broadcast %56 : vector<16x1xf32> to vector<16x128xf32>
    %78 = vector.broadcast %57 : vector<1x128xf32> to vector<16x128xf32>
    %79 = arith.addf %77, %78 : vector<16x128xf32>
    %80 = arith.subf %79, %76 : vector<16x128xf32>
    %cst_27 = arith.constant 9.99999993E-9 : f32
    %81 = vector.broadcast %cst_27 : f32 to vector<16x128xf32>
    %82 = arith.addf %80, %81 : vector<16x128xf32>
    %83 = tpu.reciprocal %82 {approx = true} : vector<16x128xf32> -> vector<16x128xf32>
    %84 = arith.mulf %76, %83 : vector<16x128xf32>
    %85 = vector.broadcast %37 : vector<16x1xf32> to vector<16x128xf32>
    %86 = vector.broadcast %49 : vector<1x128xf32> to vector<16x128xf32>
    %87 = arith.maximumf %85, %86 : vector<16x128xf32>
    %88 = vector.broadcast %34 : vector<16x1xf32> to vector<16x128xf32>
    %89 = vector.broadcast %46 : vector<1x128xf32> to vector<16x128xf32>
    %90 = arith.minimumf %88, %89 : vector<16x128xf32>
    %91 = arith.subf %87, %90 : vector<16x128xf32>
    %cst_28 = arith.constant 0.000000e+00 : f32
    %92 = vector.broadcast %cst_28 : f32 to vector<16x128xf32>
    %93 = arith.maximumf %91, %92 : vector<16x128xf32>
    %94 = vector.broadcast %43 : vector<16x1xf32> to vector<16x128xf32>
    %95 = vector.broadcast %55 : vector<1x128xf32> to vector<16x128xf32>
    %96 = arith.maximumf %94, %95 : vector<16x128xf32>
    %97 = vector.broadcast %40 : vector<16x1xf32> to vector<16x128xf32>
    %98 = vector.broadcast %52 : vector<1x128xf32> to vector<16x128xf32>
    %99 = arith.minimumf %97, %98 : vector<16x128xf32>
    %100 = arith.subf %96, %99 : vector<16x128xf32>
    %cst_29 = arith.constant 0.000000e+00 : f32
    %101 = vector.broadcast %cst_29 : f32 to vector<16x128xf32>
    %102 = arith.maximumf %100, %101 : vector<16x128xf32>
    %103 = arith.mulf %93, %102 : vector<16x128xf32>
    %104 = arith.subf %103, %80 : vector<16x128xf32>
    %cst_30 = arith.constant 9.99999993E-9 : f32
    %105 = vector.broadcast %cst_30 : f32 to vector<16x128xf32>
    %106 = arith.addf %103, %105 : vector<16x128xf32>
    %107 = tpu.reciprocal %106 {approx = true} : vector<16x128xf32> -> vector<16x128xf32>
    %108 = arith.mulf %104, %107 : vector<16x128xf32>
    %109 = arith.subf %84, %108 : vector<16x128xf32>
    %cst_31 = arith.constant 5.000000e+00 : f32
    %110 = vector.broadcast %cst_31 : f32 to vector<16x128xf32>
    %111 = arith.mulf %110, %31 : vector<16x128xf32>
    %cst_32 = arith.constant 1.000000e+00 : f32
    %112 = vector.broadcast %cst_32 : f32 to vector<16x128xf32>
    %113 = arith.mulf %112, %4 : vector<16x128xf32>
    %114 = arith.addf %111, %113 : vector<16x128xf32>
    %cst_33 = arith.constant 0.000000e+00 : f32
    %115 = vector.broadcast %cst_33 : f32 to vector<16x128xf32>
    %116 = arith.subf %115, %109 : vector<16x128xf32>
    %cst_34 = arith.constant 2.000000e+00 : f32
    %117 = vector.broadcast %cst_34 : f32 to vector<16x128xf32>
    %118 = arith.mulf %117, %116 : vector<16x128xf32>
    %119 = arith.addf %114, %118 : vector<16x128xf32>
    %c0_35 = arith.constant 0 : index
    %c0_36 = arith.constant 0 : index
    %120 = vector.load %arg6[%c0_35, %c0_36] : memref<16x128xf32, #tpu.memory_space<vmem>>, vector<16x128xf32>
    tpu.vector_store %arg6[%c0_35, %c0_36], %119 {strides = array<i32>} : memref<16x128xf32, #tpu.memory_space<vmem>>, vector<16x128xf32>,
    return
  }
  func.func @transform_0(%arg0: i32, %arg1: i32) -> (i32, i32) {
    %c0_i32 = arith.constant 0 : i32
    %c0_i32_0 = arith.constant 0 : i32
    return %c0_i32, %arg1 : i32, i32
  }
  func.func @transform_1(%arg0: i32, %arg1: i32) -> (i32, i32) {
    %c0_i32 = arith.constant 0 : i32
    %c0_i32_0 = arith.constant 0 : i32
    return %arg0, %c0_i32 : i32, i32
  }
  func.func @transform_2(%arg0: i32, %arg1: i32) -> (i32, i32) {
    %c0_i32 = arith.constant 0 : i32
    %c0_i32_0 = arith.constant 0 : i32
    return %arg0, %c0_i32 : i32, i32
  }
  func.func @transform_3(%arg0: i32, %arg1: i32) -> (i32, i32) {
    %c0_i32 = arith.constant 0 : i32
    %c0_i32_0 = arith.constant 0 : i32
    return %c0_i32, %arg1 : i32, i32
  }
  func.func @transform_4(%arg0: i32, %arg1: i32) -> (i32, i32) {
    %c0_i32 = arith.constant 0 : i32
    return %arg0, %arg1 : i32, i32
  }
}

</mosaic_0001>

<llo_original>
// kernel: fn.1
$region0: #{fn.1}
  #allocation0 [shape = 'u32[]', space=smem, size = 0x4, offset = 0x4, fixed_abs, tag = 'smem constant byte address 0x4 - core index']
  #allocation1 [shape = 'u32[72,128]{1,0:T(1,128)}', space=vmem, size = 0x9000, scoped, tag = 'internal scratch']
  %s0 = inlined_call_operand.vmem [shape: f32[8,128], index: 0, kind: input, shape index: {}]
  %s1 = inlined_call_operand.vmem [shape: f32[16,8], index: 1, kind: input, shape index: {}]
  %s2 = inlined_call_operand.vmem [shape: f32[16,4], index: 2, kind: input, shape index: {}]
  %s3 = inlined_call_operand.vmem [shape: f32[4,128], index: 3, kind: input, shape index: {}]
  %s4 = inlined_call_operand.vmem [shape: f32[16,128], index: 4, kind: output, shape index: {}]
  %s5 = sld [smem:[#allocation0]]
  $region26: #{fn.1} parent=0
    _
  %s7 = ssub.s32 1, %s5
  %s8 = scalar_select 0, %s7, %s5
  // Predicated region
  $region2: #{fn.1} parent=0 // pred_check
    _
  $region3: #{fn.1} parent=0 // pred_check_branch
    %10 = sbr.rel (0) target = $region5
  $region4: #{fn.1} parent=0 // pred_region
    _
  $region5: #{fn.1} parent=0 // pred_fallthru
    _
  // Predicated region
  $region6: #{fn.1} parent=0 // pred_check
    _
  $region7: #{fn.1} parent=0 // pred_check_branch
    %12 = sbr.rel (0) target = $region9
  $region8: #{fn.1} parent=0 // pred_region
    _
  $region9: #{fn.1} parent=0 // pred_fallthru
    _
  // Predicated region
  $region10: #{fn.1} parent=0 // pred_check
    _
  $region11: #{fn.1} parent=0 // pred_check_branch
    %14 = sbr.rel (0) target = $region13
  $region12: #{fn.1} parent=0 // pred_region
    _
  $region13: #{fn.1} parent=0 // pred_fallthru
    _
  // Predicated region
  $region14: #{fn.1} parent=0 // pred_check
    _
  $region15: #{fn.1} parent=0 // pred_check_branch
    %16 = sbr.rel (0) target = $region17
  $region16: #{fn.1} parent=0 // pred_region
    _
  $region17: #{fn.1} parent=0 // pred_fallthru
    _
  %v17 = vld [vmem:[%s1] sm:$0xff]
  %v18 = vld [vmem:[%s1 + $0x8] sm:$0xff]
  %v19 = vld [vmem:[%s0] sm:$0xff]
  %vm20 = vcmask 64512
  %v22 = vsel %vm20, %v17, 0
  %v25 = vsel %vm20, %v18, 0
  %27 = vmatpush.msra.mxu0 0.0
  %28 = vmatpush.msra.mxu0 0.0
  %29 = vmatpush.msra.mxu0 0.0
  %30 = vmatpush.msra.mxu0 0.0
  %31 = vmatpush.msra.mxu0 0.0
  %32 = vmatpush.msra.mxu0 0.0
  %33 = vmatpush.msra.mxu0 0.0
  %34 = vmatpush.msra.mxu0 0.0
  %35 = vmatpush.msra.mxu0 0.0
  %36 = vmatpush.msra.mxu0 0.0
  %37 = vmatpush.msra.mxu0 0.0
  %38 = vmatpush.msra.mxu0 0.0
  %39 = vmatpush.msra.mxu0 0.0
  %40 = vmatpush.msra.mxu0 0.0
  %41 = vmatpush.msra.mxu0 0.0
  %42 = vmatpush.msra.mxu0 %v19
  %43 = vmatmul.f32.gmra.mxu0 %v22
  %v44 = vpop.f32.mrf.mxu0
  %v45 = vadd.f32 0.0, %v44
  %46 = vmatmul.f32.gmra.mxu0 %v25
  %v47 = vpop.f32.mrf.mxu0
  %v48 = vadd.f32 0.0, %v47
  %49 = vdwg.mxu0
  %v50 = vsub.f32 0.0, %v45
  %v51 = vsub.f32 0.0, %v48
  %v52 = vld [vmem:[%s2] sm:$0xff]
  %v53 = vld [vmem:[%s2 + $0x8] sm:$0xff]
  %v54 = vld [vmem:[%s3] sm:$0x1]
  %v55 = vld [vmem:[%s3 + $0x1] sm:$0x1]
  %v56 = vld [vmem:[%s3 + $0x2] sm:$0x1]
  %v57 = vld [vmem:[%s3 + $0x3] sm:$0x1]
  %59 = vset.pattern.permute.xlu0 0
  %60 = vperm.xlu0 %59, %v52
  %v61 = vpop.permute.xlu0 %60
  %64 = vset.pattern.permute.xlu0 0
  %65 = vperm.xlu0 %64, %v53
  %v66 = vpop.permute.xlu0 %65
  %v68 = vperm.slane %v54, 0
  %v69 = vsub.f32 %v61, %v68
  %v70 = vsub.f32 %v66, %v68
  %v71 = vand.u32 2147483647, %v69
  %v72 = vand.u32 2147483647, %v70
  %73 = vset.pattern.permute.xlu0 1
  %74 = vperm.xlu0 %73, %v52
  %v75 = vpop.permute.xlu0 %74
  %77 = vset.pattern.permute.xlu0 1
  %78 = vperm.xlu0 %77, %v53
  %v79 = vpop.permute.xlu0 %78
  %v81 = vperm.slane %v55, 0
  %v82 = vsub.f32 %v75, %v81
  %v83 = vsub.f32 %v79, %v81
  %v84 = vand.u32 2147483647, %v82
  %v85 = vand.u32 2147483647, %v83
  %v86 = vadd.f32 %v71, %v84
  %v87 = vadd.f32 %v72, %v85
  %88 = vset.pattern.permute.xlu0 2
  %89 = vperm.xlu0 %88, %v52
  %v90 = vpop.permute.xlu0 %89
  %92 = vset.pattern.permute.xlu0 2
  %93 = vperm.xlu0 %92, %v53
  %v94 = vpop.permute.xlu0 %93
  %v96 = vperm.slane %v56, 0
  %v97 = vsub.f32 %v90, %v96
  %v98 = vsub.f32 %v94, %v96
  %v99 = vand.u32 2147483647, %v97
  %v100 = vand.u32 2147483647, %v98
  %v101 = vadd.f32 %v86, %v99
  %v102 = vadd.f32 %v87, %v100
  %103 = vset.pattern.permute.xlu0 3
  %104 = vperm.xlu0 %103, %v52
  %v105 = vpop.permute.xlu0 %104
  %107 = vset.pattern.permute.xlu0 3
  %108 = vperm.xlu0 %107, %v53
  %v109 = vpop.permute.xlu0 %108
  %v111 = vperm.slane %v57, 0
  %v112 = vsub.f32 %v105, %v111
  %v113 = vsub.f32 %v109, %v111
  %v114 = vand.u32 2147483647, %v112
  %v115 = vand.u32 2147483647, %v113
  %v116 = vadd.f32 %v101, %v114
  %v117 = vadd.f32 %v102, %v115
  %v118 = vmul.f32 %v52, 0.5
  %v119 = vmul.f32 %v53, 0.5
  %122 = vrot.lane.b32.xlu0 %v118, 126
  %v123 = vpop.permute.xlu0 %122
  %124 = vrot.lane.b32.xlu0 %v119, 126
  %v125 = vpop.permute.xlu0 %124
  %v128 = vsub.f32 %v52, %v123
  %v129 = vsub.f32 %v53, %v125
  %v130 = vadd.f32 %v52, %v123
  %v131 = vadd.f32 %v53, %v125
  %v132 = vmul.f32 %v56, 0.5
  %v133 = vsub.f32 %v54, %v132
  %v134 = vadd.f32 %v54, %v132
  %v135 = vmul.f32 %v57, 0.5
  %v136 = vsub.f32 %v55, %v135
  %v137 = vadd.f32 %v55, %v135
  %138 = vrot.lane.b32.xlu0 %v52, 127
  %v139 = vpop.permute.xlu0 %138
  %140 = vrot.lane.b32.xlu0 %v53, 127
  %v141 = vpop.permute.xlu0 %140
  %v144 = vmul.f32 %v52, %v139
  %v145 = vmul.f32 %v53, %v141
  %v146 = vmul.f32 %v56, %v57
  %148 = vset.pattern.permute.xlu0 0
  %149 = vperm.xlu0 %148, %v130
  %v150 = vpop.permute.xlu0 %149
  %153 = vset.pattern.permute.xlu0 0
  %154 = vperm.xlu0 %153, %v131
  %v155 = vpop.permute.xlu0 %154
  %v157 = vperm.slane %v134, 0
  %v158 = vmin.f32 %v150, %v157
  %v159 = vmin.f32 %v155, %v157
  %161 = vset.pattern.permute.xlu0 0
  %162 = vperm.xlu0 %161, %v128
  %v163 = vpop.permute.xlu0 %162
  %166 = vset.pattern.permute.xlu0 0
  %167 = vperm.xlu0 %166, %v129
  %v168 = vpop.permute.xlu0 %167
  %v170 = vperm.slane %v133, 0
  %v171 = vmax.f32 %v163, %v170
  %v172 = vmax.f32 %v168, %v170
  %v173 = vsub.f32 %v158, %v171
  %v174 = vsub.f32 %v159, %v172
  %v175 = vmax.f32 %v173, 0.0
  %v176 = vmax.f32 %v174, 0.0
  %177 = vset.pattern.permute.xlu0 1
  %178 = vperm.xlu0 %177, %v130
  %v179 = vpop.permute.xlu0 %178
  %181 = vset.pattern.permute.xlu0 1
  %182 = vperm.xlu0 %181, %v131
  %v183 = vpop.permute.xlu0 %182
  %v185 = vperm.slane %v137, 0
  %v186 = vmin.f32 %v179, %v185
  %v187 = vmin.f32 %v183, %v185
  %188 = vset.pattern.permute.xlu0 1
  %189 = vperm.xlu0 %188, %v128
  %v190 = vpop.permute.xlu0 %189
  %192 = vset.pattern.permute.xlu0 1
  %193 = vperm.xlu0 %192, %v129
  %v194 = vpop.permute.xlu0 %193
  %v196 = vperm.slane %v136, 0
  %v197 = vmax.f32 %v190, %v196
  %v198 = vmax.f32 %v194, %v196
  %v199 = vsub.f32 %v186, %v197
  %v200 = vsub.f32 %v187, %v198
  %v201 = vmax.f32 %v199, 0.0
  %v202 = vmax.f32 %v200, 0.0
  %v203 = vmul.f32 %v175, %v201
  %v204 = vmul.f32 %v176, %v202
  %206 = vset.pattern.permute.xlu0 2
  %207 = vperm.xlu0 %206, %v144
  %v208 = vpop.permute.xlu0 %207
  %211 = vset.pattern.permute.xlu0 2
  %212 = vperm.xlu0 %211, %v145
  %v213 = vpop.permute.xlu0 %212
  %v215 = vperm.slane %v146, 0
  %v216 = vadd.f32 %v208, %v215
  %v217 = vadd.f32 %v213, %v215
  %v218 = vsub.f32 %v216, %v203
  %v219 = vsub.f32 %v217, %v204
  %v220 = vadd.f32 %v218, 1e-08
  %v221 = vadd.f32 %v219, 1e-08
  %v222 = vrcp.pop %v220
  %v223 = vrcp.pop %v221
  %v224 = vmul.f32 %v203, %v222
  %v225 = vmul.f32 %v204, %v223
  %v226 = vmax.f32 %v150, %v157
  %v227 = vmax.f32 %v155, %v157
  %v228 = vmin.f32 %v163, %v170
  %v229 = vmin.f32 %v168, %v170
  %v230 = vsub.f32 %v226, %v228
  %v231 = vsub.f32 %v227, %v229
  %v232 = vmax.f32 %v230, 0.0
  %v233 = vmax.f32 %v231, 0.0
  %v234 = vmax.f32 %v179, %v185
  %v235 = vmax.f32 %v183, %v185
  %v236 = vmin.f32 %v190, %v196
  %v237 = vmin.f32 %v194, %v196
  %v238 = vsub.f32 %v234, %v236
  %v239 = vsub.f32 %v235, %v237
  %v240 = vmax.f32 %v238, 0.0
  %v241 = vmax.f32 %v239, 0.0
  %v242 = vmul.f32 %v232, %v240
  %v243 = vmul.f32 %v233, %v241
  %v244 = vsub.f32 %v242, %v218
  %v245 = vsub.f32 %v243, %v219
  %v246 = vadd.f32 %v242, 1e-08
  %v247 = vadd.f32 %v243, 1e-08
  %v248 = vrcp.pop %v246
  %v249 = vrcp.pop %v247
  %v250 = vmul.f32 %v244, %v248
  %v251 = vmul.f32 %v245, %v249
  %v252 = vsub.f32 %v224, %v250
  %v253 = vsub.f32 %v225, %v251
  %v254 = vmul.f32 %v116, 5.0
  %v255 = vmul.f32 %v117, 5.0
  %v256 = vadd.f32 %v254, %v50
  %v257 = vadd.f32 %v255, %v51
  %v258 = vsub.f32 0.0, %v252
  %v259 = vsub.f32 0.0, %v253
  %v260 = vmul.f32 %v258, 2.0
  %v261 = vmul.f32 %v259, 2.0
  %v262 = vadd.f32 %v256, %v260
  %v263 = vadd.f32 %v257, %v261
  %264 = vst [vmem:[%s4] sm:$0xff] %v262
  %265 = vst [vmem:[%s4 + $0x8] sm:$0xff] %v263
  // Predicated region
  $region18: #{fn.1} parent=0 // pred_check
    _
  $region19: #{fn.1} parent=0 // pred_check_branch
    %267 = sbr.rel (0) target = $region21
  $region20: #{fn.1} parent=0 // pred_region
    _
  $region21: #{fn.1} parent=0 // pred_fallthru
    _
  // Predicated region
  $region22: #{fn.1} parent=0 // pred_check
    _
  $region23: #{fn.1} parent=0 // pred_check_branch
    %269 = sbr.rel (0) target = $region25
  $region24: #{fn.1} parent=0 // pred_region
    _
  $region25: #{fn.1} parent=0 // pred_fallthru
    _

</llo_original>
